<compile_context>
chip_gen: v5e
topology: v5e:2x2
jax: 0.10.0
libtpu: 0.0.40
codegen_flags: <defaults>
</compile_context>

<pallas_src>
import functools

import jax
import jax.numpy as jnp
from jax.experimental import pallas as pl
from jax.experimental.pallas import tpu as pltpu


# ---------------------------------------------------------------------------
# Kernels
# ---------------------------------------------------------------------------

def _glu_batch_step(adj_b, x_b, w12, b12, w3, b3, o_ref, b, lane):
    """One batch element: temporal graph conv + GLU, stored lane-dense.

    adj_b : (P, Q) f32 adjacency for this batch element
    x_b   : (Q, N*C) lane-dense input slab
    w12   : (lane, 2*lane) fused [blockdiag(w1)|blockdiag(w2)] weights
    w3    : (lane, lane)   blockdiag(w3)
    o_ref : (bb, P*groups, lane) output block; writes o_ref[b]
    """
    # 1) Temporal graph convolution: (P,Q)@(Q,N*C), both operands lane-dense.
    y = jnp.dot(adj_b, x_b, preferred_element_type=jnp.float32)        # (P, N*C)
    P, NC = y.shape
    # 2) Tile-granular relayout to 128-lane channel groups.
    yr = y.reshape(P * (NC // lane), lane)                              # (rows, lane)
    # 3) GLU: fused gate matmul, tile-aligned split, output projection.
    h = jnp.dot(yr, w12, preferred_element_type=jnp.float32) + b12      # (rows, 2*lane)
    g = h[:, :lane] * jax.nn.sigmoid(h[:, lane:])                       # split at lane tile
    out = jnp.dot(g, w3, preferred_element_type=jnp.float32) + b3       # (rows, lane)
    # 4) Lane-dense store (last dim == lane, multiple of 128 in the packed path).
    o_ref[b] = out.astype(o_ref.dtype)


def _dtgc_kernel_static(sta_ref, x_ref, w12_ref, b12_ref, w3_ref, b3_ref, o_ref,
                        *, tdx, lane):
    """Static-adjacency branch (ep < S2D): one shared (tdx, Q) adjacency."""
    bb = x_ref.shape[0]
    adj = sta_ref[...][:tdx]                                            # (tdx, Q)
    w12 = w12_ref[...]
    b12 = b12_ref[...]
    w3 = w3_ref[...]
    b3 = b3_ref[...]
    for b in range(bb):                                                 # bb small, unrolled
        _glu_batch_step(adj, x_ref[b], w12, b12, w3, b3, o_ref, b, lane)


def _dtgc_kernel_dynamic(ti_ref, sta_ref, tadj_ref, x_ref,
                         w12_ref, b12_ref, w3_ref, b3_ref, o_ref,
                         *, tdx, lane):
    """Dynamic-adjacency branch (ep >= S2D).

    ti_ref   : (B,) int32 in SMEM (scalar prefetch)
    tadj_ref : (num_of_times, L_out, Q) resident in VMEM
    Adjacency gather + 0.5*t + 0.5*sta + [:tdx] window are fused in-kernel.
    """
    bb = x_ref.shape[0]
    step = pl.program_id(0)
    sta = sta_ref[...][:tdx]                                            # (tdx, Q)
    w12 = w12_ref[...]
    b12 = b12_ref[...]
    w3 = w3_ref[...]
    b3 = b3_ref[...]
    for b in range(bb):
        ti_b = ti_ref[step * bb + b]                                    # SMEM scalar read
        adj_b = 0.5 * tadj_ref[ti_b][:tdx] + 0.5 * sta                  # (tdx, Q)
        _glu_batch_step(adj_b, x_ref[b], w12, b12, w3, b3, o_ref, b, lane)


# ---------------------------------------------------------------------------
# Wrapper
# ---------------------------------------------------------------------------

def _choose_lane(N, C):
    """Packed GLU lane width: 128-wide channel groups when shapes allow."""
    if 128 % C == 0 and (N * C) % 128 == 0:
        return 128
    # Fallback: plain C-wide path (correct; slower lane utilization).
    return C


def prepare_dtgc_params(params, N):
    """Precompute kernel-layout GLU weights (block-diagonal, (C_in, C_out)).

    Call once and reuse across forwards when params are static.
    """
    C = params["w1"].shape[0]
    lane = _choose_lane(N, C)
    G = lane // C
    eye = jnp.eye(G, dtype=params["w1"].dtype)
    w1t = jnp.kron(eye, params["w1"].T)                                 # (lane, lane)
    w2t = jnp.kron(eye, params["w2"].T)
    w3t = jnp.kron(eye, params["w3"].T)
    w12 = jnp.concatenate([w1t, w2t], axis=1)                           # (lane, 2*lane)
    b12 = jnp.concatenate(
        [jnp.tile(params["b1"], G), jnp.tile(params["b2"], G)]).reshape(1, 2 * lane)
    b3 = jnp.tile(params["b3"], G).reshape(1, lane)
    return {
        "lane": lane,
        "w12": w12, "b12": b12, "w3": w3t, "b3": b3,
        "sta_adj": params["sta_adj"], "t_adjs": params["t_adjs"],
    }


def _default_batch_block(B, P, N, C, Q):
    """Fold the whole batch into one grid step unless a v7x megacore split
    actually has enough per-TC work to amortize the per-step overhead."""
    multi_tc = False
    try:
        kind = jax.devices()[0].device_kind.lower()
        multi_tc = "v7" in kind
    except Exception:
        pass
    if multi_tc and B >= 2 and B % 2 == 0:
        half = B // 2
        rows = half * P * N
        x_bytes = half * Q * N * C * 4
        if rows >= 512 or x_bytes >= (256 << 10):
            return half
    return B


def _per_step_vmem_bytes(bb, Q, NC, P, nrg, lane, T, L_out):
    item = 4
    x_blk = bb * Q * NC * item
    o_blk = bb * P * nrg * lane * item
    w_blk = (lane * 2 * lane + 2 * lane + lane * lane + lane) * item
    adj_blk = (T * L_out * Q + L_out * Q) * item
    # inputs/outputs are double-buffered by the pipeline
    return 2 * (x_blk + o_blk) + 2 * w_blk + 2 * adj_blk


def _dtgc_pallas(prepared, x, ti, tdx, dynamic, *, batch_block=None):
    B, Q, N, C = x.shape
    lane = prepared["lane"]
    NC = N * C
    nrg = NC // lane                       # channel groups per (b, p) row
    P = tdx
    sta = prepared["sta_adj"]
    L_out = sta.shape[0]
    t_adjs = prepared["t_adjs"]
    T = t_adjs.shape[0]

    # --- batch fold size -----------------------------------------------------
    if batch_block is None:
        bb = _default_batch_block(B, P, N, C, Q)
    else:
        bb = max(1, min(int(batch_block), B))
    while B % bb:
        bb -= 1
    # Re-derive against v7x's smaller VMEM (32 MiB scoped default / 64 MiB phys).
    budget = 24 << 20
    while bb > 1 and _per_step_vmem_bytes(bb, Q, NC, P, nrg, lane,
                                          T if dynamic else 1, L_out) > budget:
        bb -= 1
        while B % bb:
            bb -= 1
    need = _per_step_vmem_bytes(bb, Q, NC, P, nrg, lane, T if dynamic else 1, L_out)
    vmem_limit = int(min(need + (8 << 20), 100 << 20)) if need > (24 << 20) else None

    grid = (B // bb,)

    # Free contiguous merges in HBM: lane-dense x tiles, lane-dense output slab.
    xf = x.reshape(B, Q, NC)
    out_shape = jax.ShapeDtypeStruct((B, P * nrg, lane), x.dtype)

    if dynamic:
        kernel = functools.partial(_dtgc_kernel_dynamic, tdx=tdx, lane=lane)
        grid_spec = pltpu.PrefetchScalarGridSpec(
            num_scalar_prefetch=1,
            grid=grid,
            in_specs=[
                pl.BlockSpec((L_out, Q), lambda i, ti_r: (0, 0)),        # sta_adj (resident)
                pl.BlockSpec((T, L_out, Q), lambda i, ti_r: (0, 0, 0)),  # t_adjs  (resident)
                pl.BlockSpec((bb, Q, NC), lambda i, ti_r: (i, 0, 0)),    # x
                pl.BlockSpec((lane, 2 * lane), lambda i, ti_r: (0, 0)),
                pl.BlockSpec((1, 2 * lane), lambda i, ti_r: (0, 0)),
                pl.BlockSpec((lane, lane), lambda i, ti_r: (0, 0)),
                pl.BlockSpec((1, lane), lambda i, ti_r: (0, 0)),
            ],
            out_specs=pl.BlockSpec((bb, P * nrg, lane), lambda i, ti_r: (i, 0, 0)),
        )
        args = (jnp.asarray(ti, jnp.int32), sta, t_adjs, xf,
                prepared["w12"], prepared["b12"], prepared["w3"], prepared["b3"])
        # TODO(synk): for very large t_adjs (does not fit resident in VMEM),
        # switch to memory_space=pl.ANY + per-row manual DMA gather on ti.
    else:
        kernel = functools.partial(_dtgc_kernel_static, tdx=tdx, lane=lane)
        grid_spec = pltpu.PrefetchScalarGridSpec(
            num_scalar_prefetch=0,
            grid=grid,
            in_specs=[
                pl.BlockSpec((L_out, Q), lambda i: (0, 0)),              # sta_adj (resident)
                pl.BlockSpec((bb, Q, NC), lambda i: (i, 0, 0)),          # x
                pl.BlockSpec((lane, 2 * lane), lambda i: (0, 0)),
                pl.BlockSpec((1, 2 * lane), lambda i: (0, 0)),
                pl.BlockSpec((lane, lane), lambda i: (0, 0)),
                pl.BlockSpec((1, lane), lambda i: (0, 0)),
            ],
            out_specs=pl.BlockSpec((bb, P * nrg, lane), lambda i: (i, 0, 0)),
        )
        args = (sta, xf,
                prepared["w12"], prepared["b12"], prepared["w3"], prepared["b3"])

    out = pl.pallas_call(
        kernel,
        out_shape=out_shape,
        grid_spec=grid_spec,
        compiler_params=pltpu.CompilerParams(
            dimension_semantics=("parallel",),
            vmem_limit_bytes=vmem_limit),
    )(*args)

    # Free row-major reshape in HBM back to (B, P, N, C).
    return out.reshape(B, P, N, C)


def dtgc_forward(params, x, ep, tdx, S2D, ti, *, batch_block=None, prepared=None):
    """Forward pass of dynamic_temporal_graph_convolution.

    x  : (B, input_length, N, C) float32
    ep, tdx, S2D : python ints (curriculum-learning scalars, as in PyTorch)
    ti : (B,) int32 time-of-day indices (used only when ep >= S2D)
    prepared : optional output of prepare_dtgc_params for weight reuse
    """
    B, Q, N, C = x.shape
    if prepared is None:
        prepared = prepare_dtgc_params(params, N)
    dynamic = not (ep < S2D)
    return _dtgc_pallas(prepared, x, ti, tdx, dynamic, batch_block=batch_block)


# ---------------------------------------------------------------------------
# Pure-JAX reference
# ---------------------------------------------------------------------------

def dtgc_reference(params, x, ep, tdx, S2D, ti):
    """Pure-JAX reference mirroring the PyTorch forward."""
    sta_adj = params["sta_adj"]
    if ep < S2D:
        y = jnp.einsum("pq,bqnc->bpnc", sta_adj[:tdx], x)
    else:
        t_adj = params["t_adjs"][ti]
        adj = t_adj / 2.0 + sta_adj[None] / 2.0
        y = jnp.einsum("bpq,bqnc->bpnc", adj[:, :tdx], x)
    h1 = jnp.einsum("bpnc,dc->bpnd", y, params["w1"]) + params["b1"]
    h2 = jnp.einsum("bpnc,dc->bpnd", y, params["w2"]) + params["b2"]
    g = h1 * jax.nn.sigmoid(h2)
    return jnp.einsum("bpnc,dc->bpnd", g, params["w3"]) + params["b3"]


if __name__ == "__main__":
    # Module hyper-parameters (small, shapes consistent with the forward pass).
    d_model = 32          # C
    input_length = 12     # Q
    output_length = 12    # L_out (sliced to tdx in forward)
    num_of_times = 24
    source_node_num = 16  # N

    B, N = 2, source_node_num
    tdx = 8
    S2D = 5

    key = jax.random.PRNGKey(0)
    keys = jax.random.split(key, 10)
    params = {
        "sta_adj": 0.1 * jax.random.normal(keys[0], (output_length, input_length), jnp.float32),
        "t_adjs": 0.1 * jax.random.normal(keys[1], (num_of_times, output_length, input_length), jnp.float32),
        # glu: three 1x1 convs, weight (C_out, C_in), bias (C,)
        "w1": jax.random.normal(keys[2], (d_model, d_model), jnp.float32) / jnp.sqrt(d_model),
        "b1": 0.01 * jax.random.normal(keys[3], (d_model,), jnp.float32),
        "w2": jax.random.normal(keys[4], (d_model, d_model), jnp.float32) / jnp.sqrt(d_model),
        "b2": 0.01 * jax.random.normal(keys[5], (d_model,), jnp.float32),
        "w3": jax.random.normal(keys[6], (d_model, d_model), jnp.float32) / jnp.sqrt(d_model),
        "b3": 0.01 * jax.random.normal(keys[7], (d_model,), jnp.float32),
    }

    x = jax.random.normal(keys[8], (B, input_length, N, d_model), jnp.float32)
    ti = jnp.array([3, 17], dtype=jnp.int32)

    # Precompute block-diagonal GLU weights once and reuse across calls.
    prepared = prepare_dtgc_params(params, N)

    # Default (device/work-size dependent) batch folding, plus explicit checks
    # of the fully-folded (bb=B) and per-element (bb=1) grid paths, both branches.
    outs = [
        dtgc_forward(params, x, ep=0, tdx=tdx, S2D=S2D, ti=ti, prepared=prepared),
        dtgc_forward(params, x, ep=10, tdx=tdx, S2D=S2D, ti=ti, prepared=prepared),
        dtgc_forward(params, x, ep=0, tdx=tdx, S2D=S2D, ti=ti, prepared=prepared, batch_block=B),
        dtgc_forward(params, x, ep=10, tdx=tdx, S2D=S2D, ti=ti, prepared=prepared, batch_block=B),
        dtgc_forward(params, x, ep=0, tdx=tdx, S2D=S2D, ti=ti, prepared=prepared, batch_block=1),
        dtgc_forward(params, x, ep=10, tdx=tdx, S2D=S2D, ti=ti, prepared=prepared, batch_block=1),
    ]
    jax.block_until_ready(outs)

    ref_static = dtgc_reference(params, x, ep=0, tdx=tdx, S2D=S2D, ti=ti)
    ref_dynamic = dtgc_reference(params, x, ep=10, tdx=tdx, S2D=S2D, ti=ti)
    refs = [ref_static, ref_dynamic] * 3

    for out, ref in zip(outs, refs):
        assert out.shape == (B, tdx, N, d_model)
        assert jnp.allclose(out, ref, atol=1e-4, rtol=1e-4)

    print("KERNEL_OK")
</pallas_src>

<mosaic_0001>
module attributes {stable_mosaic.version = 11 : i64} {
  func.func @_dtgc_kernel_static(%arg0: i32, %arg1: memref<12x12xf32, #tpu.memory_space<vmem>>, %arg2: memref<2x12x512xf32, #tpu.memory_space<vmem>>, %arg3: memref<128x256xf32, #tpu.memory_space<vmem>>, %arg4: memref<1x256xf32, #tpu.memory_space<vmem>>, %arg5: memref<128x128xf32, #tpu.memory_space<vmem>>, %arg6: memref<1x128xf32, #tpu.memory_space<vmem>>, %arg7: memref<2x32x128xf32, #tpu.memory_space<vmem>>) attributes {dimension_semantics = [#tpu.dimension_semantics<parallel>], iteration_bounds = array<i64: 1>, scalar_prefetch = 0 : i64, scratch_operands = 0 : i64, tpu.core_type = #tpu.core_type<tc>, window_params = [{pipeline_mode = #tpu.pipeline_mode<synchronous>, transform_indices = @transform_0, window_bounds = array<i64: 12, 12>}, {transform_indices = @transform_1, window_bounds = array<i64: 2, 12, 512>}, {pipeline_mode = #tpu.pipeline_mode<synchronous>, transform_indices = @transform_2, window_bounds = array<i64: 128, 256>}, {pipeline_mode = #tpu.pipeline_mode<synchronous>, transform_indices = @transform_3, window_bounds = array<i64: 1, 256>}, {pipeline_mode = #tpu.pipeline_mode<synchronous>, transform_indices = @transform_4, window_bounds = array<i64: 128, 128>}, {pipeline_mode = #tpu.pipeline_mode<synchronous>, transform_indices = @transform_5, window_bounds = array<i64: 1, 128>}, {transform_indices = @transform_6, window_bounds = array<i64: 2, 32, 128>}]} {
    %c0 = arith.constant 0 : index
    %c0_0 = arith.constant 0 : index
    %0 = vector.load %arg1[%c0, %c0_0] : memref<12x12xf32, #tpu.memory_space<vmem>>, vector<12x12xf32>
    %1 = vector.extract_strided_slice %0 {offsets = [0, 0], sizes = [8, 12], strides = [1, 1]} : vector<12x12xf32> to vector<8x12xf32>
    %c0_1 = arith.constant 0 : index
    %c0_2 = arith.constant 0 : index
    %2 = vector.load %arg3[%c0_1, %c0_2] : memref<128x256xf32, #tpu.memory_space<vmem>>, vector<128x256xf32>
    %c0_3 = arith.constant 0 : index
    %c0_4 = arith.constant 0 : index
    %3 = vector.load %arg4[%c0_3, %c0_4] : memref<1x256xf32, #tpu.memory_space<vmem>>, vector<1x256xf32>
    %c0_5 = arith.constant 0 : index
    %c0_6 = arith.constant 0 : index
    %4 = vector.load %arg5[%c0_5, %c0_6] : memref<128x128xf32, #tpu.memory_space<vmem>>, vector<128x128xf32>
    %c0_7 = arith.constant 0 : index
    %c0_8 = arith.constant 0 : index
    %5 = vector.load %arg6[%c0_7, %c0_8] : memref<1x128xf32, #tpu.memory_space<vmem>>, vector<1x128xf32>
    %c0_9 = arith.constant 0 : index
    %c0_10 = arith.constant 0 : index
    %c0_11 = arith.constant 0 : index
    %6 = vector.load %arg2[%c0_9, %c0_10, %c0_11] : memref<2x12x512xf32, #tpu.memory_space<vmem>>, vector<1x12x512xf32>
    %7 = vector.shape_cast %6 : vector<1x12x512xf32> to vector<12x512xf32>
    %cst = arith.constant dense<0.000000e+00> : vector<8x512xf32>
    %8 = tpu.matmul %1, %7, %cst {dimension_numbers = #tpu.dot_dimension_numbers<[1], [0], [0], [1], [0, 0, 1, 1], [], []>} : vector<8x12xf32>, vector<12x512xf32>, vector<8x512xf32> -> vector<8x512xf32>
    %9 = vector.shape_cast %8 : vector<8x512xf32> to vector<32x128xf32>
    %cst_12 = arith.constant dense<0.000000e+00> : vector<32x256xf32>
    %10 = tpu.matmul %9, %2, %cst_12 {dimension_numbers = #tpu.dot_dimension_numbers<[1], [0], [0], [1], [0, 0, 1, 1], [], []>} : vector<32x128xf32>, vector<128x256xf32>, vector<32x256xf32> -> vector<32x256xf32>
    %11 = vector.broadcast %3 : vector<1x256xf32> to vector<32x256xf32>
    %12 = arith.addf %10, %11 : vector<32x256xf32>
    %13 = vector.extract_strided_slice %12 {offsets = [0, 0], sizes = [32, 128], strides = [1, 1]} : vector<32x256xf32> to vector<32x128xf32>
    %14 = vector.extract_strided_slice %12 {offsets = [0, 128], sizes = [32, 128], strides = [1, 1]} : vector<32x256xf32> to vector<32x128xf32>
    %15 = arith.negf %14 : vector<32x128xf32>
    %16 = math.exp %15 : vector<32x128xf32>
    %cst_13 = arith.constant 1.000000e+00 : f32
    %17 = vector.broadcast %cst_13 : f32 to vector<32x128xf32>
    %18 = arith.addf %17, %16 : vector<32x128xf32>
    %19 = arith.divf %17, %18 : vector<32x128xf32>
    %20 = arith.mulf %13, %19 : vector<32x128xf32>
    %cst_14 = arith.constant dense<0.000000e+00> : vector<32x128xf32>
    %21 = tpu.matmul %20, %4, %cst_14 {dimension_numbers = #tpu.dot_dimension_numbers<[1], [0], [0], [1], [0, 0, 1, 1], [], []>} : vector<32x128xf32>, vector<128x128xf32>, vector<32x128xf32> -> vector<32x128xf32>
    %22 = vector.broadcast %5 : vector<1x128xf32> to vector<32x128xf32>
    %23 = arith.addf %21, %22 : vector<32x128xf32>
    %c0_15 = arith.constant 0 : index
    %c0_16 = arith.constant 0 : index
    %c0_17 = arith.constant 0 : index
    %24 = vector.load %arg7[%c0_15, %c0_16, %c0_17] : memref<2x32x128xf32, #tpu.memory_space<vmem>>, vector<1x32x128xf32>
    %25 = vector.shape_cast %24 : vector<1x32x128xf32> to vector<32x128xf32>
    %26 = vector.shape_cast %23 : vector<32x128xf32> to vector<1x32x128xf32>
    tpu.vector_store %arg7[%c0_15, %c0_16, %c0_17], %26 {strides = array<i32>} : memref<2x32x128xf32, #tpu.memory_space<vmem>>, vector<1x32x128xf32>,
    %c1 = arith.constant 1 : index
    %c0_18 = arith.constant 0 : index
    %c0_19 = arith.constant 0 : index
    %27 = vector.load %arg2[%c1, %c0_18, %c0_19] : memref<2x12x512xf32, #tpu.memory_space<vmem>>, vector<1x12x512xf32>
    %28 = vector.shape_cast %27 : vector<1x12x512xf32> to vector<12x512xf32>
    %cst_20 = arith.constant dense<0.000000e+00> : vector<8x512xf32>
    %29 = tpu.matmul %1, %28, %cst_20 {dimension_numbers = #tpu.dot_dimension_numbers<[1], [0], [0], [1], [0, 0, 1, 1], [], []>} : vector<8x12xf32>, vector<12x512xf32>, vector<8x512xf32> -> vector<8x512xf32>
    %30 = vector.shape_cast %29 : vector<8x512xf32> to vector<32x128xf32>
    %cst_21 = arith.constant dense<0.000000e+00> : vector<32x256xf32>
    %31 = tpu.matmul %30, %2, %cst_21 {dimension_numbers = #tpu.dot_dimension_numbers<[1], [0], [0], [1], [0, 0, 1, 1], [], []>} : vector<32x128xf32>, vector<128x256xf32>, vector<32x256xf32> -> vector<32x256xf32>
    %32 = vector.broadcast %3 : vector<1x256xf32> to vector<32x256xf32>
    %33 = arith.addf %31, %32 : vector<32x256xf32>
    %34 = vector.extract_strided_slice %33 {offsets = [0, 0], sizes = [32, 128], strides = [1, 1]} : vector<32x256xf32> to vector<32x128xf32>
    %35 = vector.extract_strided_slice %33 {offsets = [0, 128], sizes = [32, 128], strides = [1, 1]} : vector<32x256xf32> to vector<32x128xf32>
    %36 = arith.negf %35 : vector<32x128xf32>
    %37 = math.exp %36 : vector<32x128xf32>
    %cst_22 = arith.constant 1.000000e+00 : f32
    %38 = vector.broadcast %cst_22 : f32 to vector<32x128xf32>
    %39 = arith.addf %38, %37 : vector<32x128xf32>
    %40 = arith.divf %38, %39 : vector<32x128xf32>
    %41 = arith.mulf %34, %40 : vector<32x128xf32>
    %cst_23 = arith.constant dense<0.000000e+00> : vector<32x128xf32>
    %42 = tpu.matmul %41, %4, %cst_23 {dimension_numbers = #tpu.dot_dimension_numbers<[1], [0], [0], [1], [0, 0, 1, 1], [], []>} : vector<32x128xf32>, vector<128x128xf32>, vector<32x128xf32> -> vector<32x128xf32>
    %43 = vector.broadcast %5 : vector<1x128xf32> to vector<32x128xf32>
    %44 = arith.addf %42, %43 : vector<32x128xf32>
    %c1_24 = arith.constant 1 : index
    %c0_25 = arith.constant 0 : index
    %c0_26 = arith.constant 0 : index
    %45 = vector.load %arg7[%c1_24, %c0_25, %c0_26] : memref<2x32x128xf32, #tpu.memory_space<vmem>>, vector<1x32x128xf32>
    %46 = vector.shape_cast %45 : vector<1x32x128xf32> to vector<32x128xf32>
    %47 = vector.shape_cast %44 : vector<32x128xf32> to vector<1x32x128xf32>
    tpu.vector_store %arg7[%c1_24, %c0_25, %c0_26], %47 {strides = array<i32>} : memref<2x32x128xf32, #tpu.memory_space<vmem>>, vector<1x32x128xf32>,
    return
  }
  func.func @transform_0(%arg0: i32) -> (i32, i32) {
    %c0_i32 = arith.constant 0 : i32
    %c0_i32_0 = arith.constant 0 : i32
    %c0_i32_1 = arith.constant 0 : i32
    return %c0_i32, %c0_i32_0 : i32, i32
  }
  func.func @transform_1(%arg0: i32) -> (i32, i32, i32) {
    %c0_i32 = arith.constant 0 : i32
    %c0_i32_0 = arith.constant 0 : i32
    %c0_i32_1 = arith.constant 0 : i32
    return %arg0, %c0_i32, %c0_i32_0 : i32, i32, i32
  }
  func.func @transform_2(%arg0: i32) -> (i32, i32) {
    %c0_i32 = arith.constant 0 : i32
    %c0_i32_0 = arith.constant 0 : i32
    %c0_i32_1 = arith.constant 0 : i32
    return %c0_i32, %c0_i32_0 : i32, i32
  }
  func.func @transform_3(%arg0: i32) -> (i32, i32) {
    %c0_i32 = arith.constant 0 : i32
    %c0_i32_0 = arith.constant 0 : i32
    %c0_i32_1 = arith.constant 0 : i32
    return %c0_i32, %c0_i32_0 : i32, i32
  }
  func.func @transform_4(%arg0: i32) -> (i32, i32) {
    %c0_i32 = arith.constant 0 : i32
    %c0_i32_0 = arith.constant 0 : i32
    %c0_i32_1 = arith.constant 0 : i32
    return %c0_i32, %c0_i32_0 : i32, i32
  }
  func.func @transform_5(%arg0: i32) -> (i32, i32) {
    %c0_i32 = arith.constant 0 : i32
    %c0_i32_0 = arith.constant 0 : i32
    %c0_i32_1 = arith.constant 0 : i32
    return %c0_i32, %c0_i32_0 : i32, i32
  }
  func.func @transform_6(%arg0: i32) -> (i32, i32, i32) {
    %c0_i32 = arith.constant 0 : i32
    %c0_i32_0 = arith.constant 0 : i32
    %c0_i32_1 = arith.constant 0 : i32
    return %arg0, %c0_i32, %c0_i32_0 : i32, i32, i32
  }
}

</mosaic_0001>

<llo_original>
// kernel: tpu_custom_call.1
$region0: #{tpu_custom_call.1}
  #allocation0 [shape = 'u32[]', space=smem, size = 0x4, offset = 0x4, fixed_abs, tag = 'smem constant byte address 0x4 - core index']
  #allocation1 [shape = 'u32[72,128]{1,0:T(1,128)}', space=vmem, size = 0x9000, scoped, tag = 'internal scratch']
  %s0 = inlined_call_operand.vmem [shape: f32[12,12], index: 0, kind: input, shape index: {}]
  %s1 = inlined_call_operand.vmem [shape: f32[2,12,512], index: 1, kind: input, shape index: {}]
  %s2 = inlined_call_operand.hbm [shape: f32[128,256], index: 2, kind: input, shape index: {}]
  %s3 = inlined_call_operand.vmem [shape: f32[1,256], index: 3, kind: input, shape index: {}]
  %s4 = inlined_call_operand.vmem [shape: f32[128,128], index: 4, kind: input, shape index: {}]
  %s5 = inlined_call_operand.vmem [shape: f32[1,128], index: 5, kind: input, shape index: {}]
  %s6 = inlined_call_operand.hbm [shape: f32[2,32,128], index: 6, kind: output, shape index: {}]
  %s7 = sld [smem:[#allocation0]]
  $region38: #{tpu_custom_call.1} parent=0
    _
  %s9 = ssub.s32 1, %s7
  %s10 = scalar_select 0, %s9, %s7
  $region1: #{tpu_custom_call.1} parent=0
    #allocation2 [shape = 'u8[131072]{0}', space=vmem, size = 0x20000, scoped, tag = 'input window, operand 2, single buffered']
    #allocation3 [shape = 's32[1]{0}', space=sflag, size = 0x4, scoped, tag = 'scoped memory for tpu_custom_call.1']
    #allocation4 [shape = 's32[1]{0}', space=sflag, size = 0x4, scoped, tag = 'scoped memory for tpu_custom_call.1']
    #allocation5 [shape = 'u8[32768]{0}', space=vmem, size = 0x8000, scoped, tag = 'output window, operand 0, single buffered']
    %11 = vsyncpa [#allocation3], 0
    %12 = vsyncpa [#allocation4], 0
    // Predicated region
    $region2: #{tpu_custom_call.1} parent=1 // pred_check
      _
    $region3: #{tpu_custom_call.1} parent=1 // pred_check_branch
      %14 = sbr.rel (0) target = $region5
    $region4: #{tpu_custom_call.1} parent=1 // pred_region
      _
    $region5: #{tpu_custom_call.1} parent=1 // pred_fallthru
      _
    // Predicated region
    $region6: #{tpu_custom_call.1} parent=1 // pred_check
      _
    $region7: #{tpu_custom_call.1} parent=1 // pred_check_branch
      %16 = sbr.rel (0) target = $region9
    $region8: #{tpu_custom_call.1} parent=1 // pred_region
      _
    $region9: #{tpu_custom_call.1} parent=1 // pred_fallthru
      _
    // Predicated region
    $region10: #{tpu_custom_call.1} parent=1 // pred_check
      _
    $region11: #{tpu_custom_call.1} parent=1 // pred_check_branch
      %18 = sbr.rel (0) target = $region13
    $region12: #{tpu_custom_call.1} parent=1 // pred_region
      %20 = vsyncadd [#allocation3], 0
      %s21 = sshll.u32 %s2, 4
      %s22 = int_to_ptr.hbm [resolvable:$true] %s21
      %s23 = sshll.u32 [#allocation2], 4
      %s24 = int_to_ptr.vmem [resolvable:$true] %s23
      %29 = dma.hbm_to_vmem [thread:$0]  %s22, 4096, %s24, [#allocation3], 256, 256, 16
    $region13: #{tpu_custom_call.1} parent=1 // pred_fallthru
      _
    // Predicated region
    $region14: #{tpu_custom_call.1} parent=1 // pred_check
      _
    $region15: #{tpu_custom_call.1} parent=1 // pred_check_branch
      %31 = sbr.rel (0) target = $region17
    $region16: #{tpu_custom_call.1} parent=1 // pred_region
      _
    $region17: #{tpu_custom_call.1} parent=1 // pred_fallthru
      _
    // Predicated region
    $region18: #{tpu_custom_call.1} parent=1 // pred_check
      _
    $region19: #{tpu_custom_call.1} parent=1 // pred_check_branch
      %33 = sbr.rel (0) target = $region21
    $region20: #{tpu_custom_call.1} parent=1 // pred_region
      _
    $region21: #{tpu_custom_call.1} parent=1 // pred_fallthru
      _
    // Predicated region
    $region22: #{tpu_custom_call.1} parent=1 // pred_check
      _
    $region23: #{tpu_custom_call.1} parent=1 // pred_check_branch
      %35 = sbr.rel (0) target = $region25
    $region24: #{tpu_custom_call.1} parent=1 // pred_region
      _
    $region25: #{tpu_custom_call.1} parent=1 // pred_fallthru
      _
    // Predicated region
    $region26: #{tpu_custom_call.1} parent=1 // pred_check
      _
    $region27: #{tpu_custom_call.1} parent=1 // pred_check_branch
      %37 = sbr.rel (0) target = $region29
    $region28: #{tpu_custom_call.1} parent=1 // pred_region
      %39 = dma.done [#allocation3], 4096
    $region29: #{tpu_custom_call.1} parent=1 // pred_fallthru
      _
    %v40 = vld [vmem:[%s0] sm:$0xff]
    %v41 = vld [vmem:[#allocation2] sm:$0xff]
    %v42 = vld [vmem:[#allocation2 + $0x8] sm:$0xff]
    %v43 = vld [vmem:[#allocation2 + $0x10] sm:$0xff]
    %v44 = vld [vmem:[#allocation2 + $0x18] sm:$0xff]
    %v45 = vld [vmem:[#allocation2 + $0x20] sm:$0xff]
    %v46 = vld [vmem:[#allocation2 + $0x28] sm:$0xff]
    %v47 = vld [vmem:[#allocation2 + $0x30] sm:$0xff]
    %v48 = vld [vmem:[#allocation2 + $0x38] sm:$0xff]
    %v49 = vld [vmem:[#allocation2 + $0x40] sm:$0xff]
    %v50 = vld [vmem:[#allocation2 + $0x48] sm:$0xff]
    %v51 = vld [vmem:[#allocation2 + $0x50] sm:$0xff]
    %v52 = vld [vmem:[#allocation2 + $0x58] sm:$0xff]
    %v53 = vld [vmem:[#allocation2 + $0x60] sm:$0xff]
    %v54 = vld [vmem:[#allocation2 + $0x68] sm:$0xff]
    %v55 = vld [vmem:[#allocation2 + $0x70] sm:$0xff]
    %v56 = vld [vmem:[#allocation2 + $0x78] sm:$0xff]
    %v57 = vld [vmem:[#allocation2 + $0x80] sm:$0xff]
    %v58 = vld [vmem:[#allocation2 + $0x88] sm:$0xff]
    %v59 = vld [vmem:[#allocation2 + $0x90] sm:$0xff]
    %v60 = vld [vmem:[#allocation2 + $0x98] sm:$0xff]
    %v61 = vld [vmem:[#allocation2 + $0xa0] sm:$0xff]
    %v62 = vld [vmem:[#allocation2 + $0xa8] sm:$0xff]
    %v63 = vld [vmem:[#allocation2 + $0xb0] sm:$0xff]
    %v64 = vld [vmem:[#allocation2 + $0xb8] sm:$0xff]
    %v65 = vld [vmem:[#allocation2 + $0xc0] sm:$0xff]
    %v66 = vld [vmem:[#allocation2 + $0xc8] sm:$0xff]
    %v67 = vld [vmem:[#allocation2 + $0xd0] sm:$0xff]
    %v68 = vld [vmem:[#allocation2 + $0xd8] sm:$0xff]
    %v69 = vld [vmem:[#allocation2 + $0xe0] sm:$0xff]
    %v70 = vld [vmem:[#allocation2 + $0xe8] sm:$0xff]
    %v71 = vld [vmem:[#allocation2 + $0xf0] sm:$0xff]
    %v72 = vld [vmem:[#allocation2 + $0xf8] sm:$0xff]
    %v73 = vld [vmem:[%s3] sm:$0x3]
    %v74 = vld [vmem:[%s4] sm:$0xff]
    %v75 = vld [vmem:[%s4 + $0x8] sm:$0xff]
    %v76 = vld [vmem:[%s4 + $0x10] sm:$0xff]
    %v77 = vld [vmem:[%s4 + $0x18] sm:$0xff]
    %v78 = vld [vmem:[%s4 + $0x20] sm:$0xff]
    %v79 = vld [vmem:[%s4 + $0x28] sm:$0xff]
    %v80 = vld [vmem:[%s4 + $0x30] sm:$0xff]
    %v81 = vld [vmem:[%s4 + $0x38] sm:$0xff]
    %v82 = vld [vmem:[%s4 + $0x40] sm:$0xff]
    %v83 = vld [vmem:[%s4 + $0x48] sm:$0xff]
    %v84 = vld [vmem:[%s4 + $0x50] sm:$0xff]
    %v85 = vld [vmem:[%s4 + $0x58] sm:$0xff]
    %v86 = vld [vmem:[%s4 + $0x60] sm:$0xff]
    %v87 = vld [vmem:[%s4 + $0x68] sm:$0xff]
    %v88 = vld [vmem:[%s4 + $0x70] sm:$0xff]
    %v89 = vld [vmem:[%s4 + $0x78] sm:$0xff]
    %v90 = vld [vmem:[%s5] sm:$0x1]
    %v91 = vld [vmem:[%s1] sm:$0xff]
    %v92 = vld [vmem:[%s1 + $0x8] sm:$0xff]
    %v93 = vld [vmem:[%s1 + $0x10] sm:$0xff]
    %v94 = vld [vmem:[%s1 + $0x18] sm:$0xff]
    %v95 = vld [vmem:[%s1 + $0x20] sm:$0xf]
    %v96 = vld [vmem:[%s1 + $0x28] sm:$0xf]
    %v97 = vld [vmem:[%s1 + $0x30] sm:$0xf]
    %v98 = vld [vmem:[%s1 + $0x38] sm:$0xf]
    %vm99 = vcmask 97280
    %v101 = vsel %vm99, %v40, 0
    %vm103 = vcmask 1043456
    %v105 = vsel %vm103, %v95, 0
    %v108 = vsel %vm103, %v96, 0
    %v111 = vsel %vm103, %v97, 0
    %v114 = vsel %vm103, %v98, 0
    %116 = vmatpush.msra.mxu0 0.0
    %117 = vmatpush.msra.mxu0 0.0
    %118 = vmatpush.msra.mxu0 0.0
    %119 = vmatpush.msra.mxu0 0.0
    %120 = vmatpush.msra.mxu0 0.0
    %121 = vmatpush.msra.mxu0 0.0
    %122 = vmatpush.msra.mxu0 0.0
    %123 = vmatpush.msra.mxu0 0.0
    %124 = vmatpush.msra.mxu0 0.0
    %125 = vmatpush.msra.mxu0 0.0
    %126 = vmatpush.msra.mxu0 0.0
    %127 = vmatpush.msra.mxu0 0.0
    %128 = vmatpush.msra.mxu0 0.0
    %129 = vmatpush.msra.mxu0 0.0
    %130 = vmatpush.msra.mxu0 %v105
    %131 = vmatpush.msra.mxu0 %v91
    %132 = vmatmul.f32.gmra.mxu0 %v101
    %v133 = vpop.f32.mrf.mxu0
    %v134 = vadd.f32 0.0, %v133
    %135 = vdwg.mxu0
    %136 = vmatpush.msra.mxu0 0.0
    %137 = vmatpush.msra.mxu0 0.0
    %138 = vmatpush.msra.mxu0 0.0
    %139 = vmatpush.msra.mxu0 0.0
    %140 = vmatpush.msra.mxu0 0.0
    %141 = vmatpush.msra.mxu0 0.0
    %142 = vmatpush.msra.mxu0 0.0
    %143 = vmatpush.msra.mxu0 0.0
    %144 = vmatpush.msra.mxu0 0.0
    %145 = vmatpush.msra.mxu0 0.0
    %146 = vmatpush.msra.mxu0 0.0
    %147 = vmatpush.msra.mxu0 0.0
    %148 = vmatpush.msra.mxu0 0.0
    %149 = vmatpush.msra.mxu0 0.0
    %150 = vmatpush.msra.mxu0 %v108
    %151 = vmatpush.msra.mxu0 %v92
    %152 = vmatmul.f32.gmra.mxu0 %v101
    %v153 = vpop.f32.mrf.mxu0
    %v154 = vadd.f32 0.0, %v153
    %155 = vdwg.mxu0
    %156 = vmatpush.msra.mxu0 0.0
    %157 = vmatpush.msra.mxu0 0.0
    %158 = vmatpush.msra.mxu0 0.0
    %159 = vmatpush.msra.mxu0 0.0
    %160 = vmatpush.msra.mxu0 0.0
    %161 = vmatpush.msra.mxu0 0.0
    %162 = vmatpush.msra.mxu0 0.0
    %163 = vmatpush.msra.mxu0 0.0
    %164 = vmatpush.msra.mxu0 0.0
    %165 = vmatpush.msra.mxu0 0.0
    %166 = vmatpush.msra.mxu0 0.0
    %167 = vmatpush.msra.mxu0 0.0
    %168 = vmatpush.msra.mxu0 0.0
    %169 = vmatpush.msra.mxu0 0.0
    %170 = vmatpush.msra.mxu0 %v111
    %171 = vmatpush.msra.mxu0 %v93
    %172 = vmatmul.f32.gmra.mxu0 %v101
    %v173 = vpop.f32.mrf.mxu0
    %v174 = vadd.f32 0.0, %v173
    %175 = vdwg.mxu0
    %176 = vmatpush.msra.mxu0 0.0
    %177 = vmatpush.msra.mxu0 0.0
    %178 = vmatpush.msra.mxu0 0.0
    %179 = vmatpush.msra.mxu0 0.0
    %180 = vmatpush.msra.mxu0 0.0
    %181 = vmatpush.msra.mxu0 0.0
    %182 = vmatpush.msra.mxu0 0.0
    %183 = vmatpush.msra.mxu0 0.0
    %184 = vmatpush.msra.mxu0 0.0
    %185 = vmatpush.msra.mxu0 0.0
    %186 = vmatpush.msra.mxu0 0.0
    %187 = vmatpush.msra.mxu0 0.0
    %188 = vmatpush.msra.mxu0 0.0
    %189 = vmatpush.msra.mxu0 0.0
    %190 = vmatpush.msra.mxu0 %v114
    %191 = vmatpush.msra.mxu0 %v94
    %192 = vmatmul.f32.gmra.mxu0 %v101
    %v193 = vpop.f32.mrf.mxu0
    %v194 = vadd.f32 0.0, %v193
    %195 = vdwg.mxu0
    %v200 = vrot.slane %v154, 6
    %v201 = vrot.slane %v174, 4
    %v202 = vrot.slane %v194, 2
    %vm203 = vcmask 1041408
    %v204 = vsel %vm203, %v134, %v200
    %vm205 = vcmask 1045508
    %v206 = vsel %vm205, %v201, %v202
    %v207 = vsel %vm103, %v204, %v206
    %vm208 = vcmask 1043458
    %v209 = vsel %vm208, %v134, %v200
    %vm210 = vcmask 1045504
    %v211 = vsel %vm210, %v202, %v201
    %vm212 = vcmask 1045506
    %v213 = vsel %vm212, %v209, %v211
    %v214 = vrot.slane %v213, 2
    %v215 = vsel %vm205, %v134, %v200
    %v216 = vsel %vm203, %v201, %v202
    %v217 = vsel %vm103, %v216, %v215
    %v218 = vrot.slane %v217, 4
    %v219 = vsel %vm210, %v200, %v134
    %v220 = vsel %vm208, %v201, %v202
    %v221 = vsel %vm212, %v220, %v219
    %v222 = vrot.slane %v221, 6
    %v228 = vunpack.c.l.s4 1966171168
    %v229 = vunpack.c.0.s8 %v228
    %v230 = vperm.slane %v207, %v229
    %v232 = vunpack.c.l.s4 1966171168
    %v233 = vunpack.c.0.s8 %v232
    %v234 = vperm.slane %v214, %v233
    %v236 = vunpack.c.l.s4 1966171168
    %v237 = vunpack.c.0.s8 %v236
    %v238 = vperm.slane %v218, %v237
    %v240 = vunpack.c.l.s4 1966171168
    %v241 = vunpack.c.0.s8 %v240
    %v242 = vperm.slane %v222, %v241
    %v244 = vperm.slane %v73, 0
    %v245 = vperm.slane %v73, 1
    %248 = vmatpush.msra.mxu0 %v71
    %249 = vmatpush.msra.mxu0 %v69
    %250 = vmatpush.msra.mxu0 %v67
    %251 = vmatpush.msra.mxu0 %v65
    %252 = vmatpush.msra.mxu0 %v63
    %253 = vmatpush.msra.mxu0 %v61
    %254 = vmatpush.msra.mxu0 %v59
    %255 = vmatpush.msra.mxu0 %v57
    %256 = vmatpush.msra.mxu0 %v55
    %257 = vmatpush.msra.mxu0 %v53
    %258 = vmatpush.msra.mxu0 %v51
    %259 = vmatpush.msra.mxu0 %v49
    %260 = vmatpush.msra.mxu0 %v47
    %261 = vmatpush.msra.mxu0 %v45
    %262 = vmatpush.msra.mxu0 %v43
    %263 = vmatpush.msra.mxu0 %v41
    %264 = vmatmul.f32.gmra.mxu0 %v230
    %v265 = vpop.f32.mrf.mxu0
    %v266 = vadd.f32 %v244, %v265
    %267 = vmatmul.f32.gmra.mxu0 %v234
    %v268 = vpop.f32.mrf.mxu0
    %v269 = vadd.f32 %v244, %v268
    %270 = vmatmul.f32.gmra.mxu0 %v238
    %v271 = vpop.f32.mrf.mxu0
    %v272 = vadd.f32 %v244, %v271
    %273 = vmatmul.f32.gmra.mxu0 %v242
    %v274 = vpop.f32.mrf.mxu0
    %v275 = vadd.f32 %v244, %v274
    %276 = vdwg.mxu0
    %277 = vmatpush.msra.mxu0 %v72
    %278 = vmatpush.msra.mxu0 %v70
    %279 = vmatpush.msra.mxu0 %v68
    %280 = vmatpush.msra.mxu0 %v66
    %281 = vmatpush.msra.mxu0 %v64
    %282 = vmatpush.msra.mxu0 %v62
    %283 = vmatpush.msra.mxu0 %v60
    %284 = vmatpush.msra.mxu0 %v58
    %285 = vmatpush.msra.mxu0 %v56
    %286 = vmatpush.msra.mxu0 %v54
    %287 = vmatpush.msra.mxu0 %v52
    %288 = vmatpush.msra.mxu0 %v50
    %289 = vmatpush.msra.mxu0 %v48
    %290 = vmatpush.msra.mxu0 %v46
    %291 = vmatpush.msra.mxu0 %v44
    %292 = vmatpush.msra.mxu0 %v42
    %293 = vmatmul.f32.gmra.mxu0 %v230
    %v294 = vpop.f32.mrf.mxu0
    %v295 = vadd.f32 %v245, %v294
    %296 = vmatmul.f32.gmra.mxu0 %v234
    %v297 = vpop.f32.mrf.mxu0
    %v298 = vadd.f32 %v245, %v297
    %299 = vmatmul.f32.gmra.mxu0 %v238
    %v300 = vpop.f32.mrf.mxu0
    %v301 = vadd.f32 %v245, %v300
    %302 = vmatmul.f32.gmra.mxu0 %v242
    %v303 = vpop.f32.mrf.mxu0
    %v304 = vadd.f32 %v245, %v303
    %305 = vdwg.mxu0
    %v306 = vxor.u32 %v295, 2147483648
    %v307 = vxor.u32 %v298, 2147483648
    %v308 = vxor.u32 %v301, 2147483648
    %v309 = vxor.u32 %v304, 2147483648
    %v310 = vmul.f32 %v306, 1.442695
    %v311 = vpow.pop %v310
    %v312 = vmul.f32 %v307, 1.442695
    %v313 = vpow.pop %v312
    %v314 = vmul.f32 %v308, 1.442695
    %v315 = vpow.pop %v314
    %v316 = vmul.f32 %v309, 1.442695
    %v317 = vpow.pop %v316
    %v318 = vadd.f32 %v311, 1.0
    %v319 = vadd.f32 %v313, 1.0
    %v320 = vadd.f32 %v315, 1.0
    %v321 = vadd.f32 %v317, 1.0
    %v322 = vrcp.pop %v318
    %v323 = vmul.f32 %v318, %v322
    %v324 = vsub.f32 1.0, %v323
    %v325 = vmul.f32 %v322, %v324
    %v326 = vadd.f32 %v322, %v325
    %vm327 = vweird.f32 %v318
    %vm328 = vweird.f32 %v322
    %vm329 = vmor %vm327, %vm328
    %v330 = vsel %vm329, %v322, %v326
    %v331 = vand.u32 2147483647, %v318
    %vm332 = vcmp.eq.f32.partialorder %v331, 8.507059e+37
    %v333 = vand.u32 %v318, 2147483648
    %v334 = vor.u32 1.1754944e-38, %v333
    %v335 = vsel %vm332, %v334, %v330
    %v336 = vmul.f32 1.0, %v335
    %v337 = vrcp.pop %v319
    %v338 = vmul.f32 %v319, %v337
    %v339 = vsub.f32 1.0, %v338
    %v340 = vmul.f32 %v337, %v339
    %v341 = vadd.f32 %v337, %v340
    %vm342 = vweird.f32 %v319
    %vm343 = vweird.f32 %v337
    %vm344 = vmor %vm342, %vm343
    %v345 = vsel %vm344, %v337, %v341
    %v346 = vand.u32 2147483647, %v319
    %vm347 = vcmp.eq.f32.partialorder %v346, 8.507059e+37
    %v348 = vand.u32 %v319, 2147483648
    %v349 = vor.u32 1.1754944e-38, %v348
    %v350 = vsel %vm347, %v349, %v345
    %v351 = vmul.f32 1.0, %v350
    %v352 = vrcp.pop %v320
    %v353 = vmul.f32 %v320, %v352
    %v354 = vsub.f32 1.0, %v353
    %v355 = vmul.f32 %v352, %v354
    %v356 = vadd.f32 %v352, %v355
    %vm357 = vweird.f32 %v320
    %vm358 = vweird.f32 %v352
    %vm359 = vmor %vm357, %vm358
    %v360 = vsel %vm359, %v352, %v356
    %v361 = vand.u32 2147483647, %v320
    %vm362 = vcmp.eq.f32.partialorder %v361, 8.507059e+37
    %v363 = vand.u32 %v320, 2147483648
    %v364 = vor.u32 1.1754944e-38, %v363
    %v365 = vsel %vm362, %v364, %v360
    %v366 = vmul.f32 1.0, %v365
    %v367 = vrcp.pop %v321
    %v368 = vmul.f32 %v321, %v367
    %v369 = vsub.f32 1.0, %v368
    %v370 = vmul.f32 %v367, %v369
    %v371 = vadd.f32 %v367, %v370
    %vm372 = vweird.f32 %v321
    %vm373 = vweird.f32 %v367
    %vm374 = vmor %vm372, %vm373
    %v375 = vsel %vm374, %v367, %v371
    %v376 = vand.u32 2147483647, %v321
    %vm377 = vcmp.eq.f32.partialorder %v376, 8.507059e+37
    %v378 = vand.u32 %v321, 2147483648
    %v379 = vor.u32 1.1754944e-38, %v378
    %v380 = vsel %vm377, %v379, %v375
    %v381 = vmul.f32 1.0, %v380
    %v382 = vmul.f32 %v266, %v336
    %v383 = vmul.f32 %v269, %v351
    %v384 = vmul.f32 %v272, %v366
    %v385 = vmul.f32 %v275, %v381
    %v387 = vperm.slane %v90, 0
    %389 = vmatpush.msra.mxu0 %v89
    %390 = vmatpush.msra.mxu0 %v88
    %391 = vmatpush.msra.mxu0 %v87
    %392 = vmatpush.msra.mxu0 %v86
    %393 = vmatpush.msra.mxu0 %v85
    %394 = vmatpush.msra.mxu0 %v84
    %395 = vmatpush.msra.mxu0 %v83
    %396 = vmatpush.msra.mxu0 %v82
    %397 = vmatpush.msra.mxu0 %v81
    %398 = vmatpush.msra.mxu0 %v80
    %399 = vmatpush.msra.mxu0 %v79
    %400 = vmatpush.msra.mxu0 %v78
    %401 = vmatpush.msra.mxu0 %v77
    %402 = vmatpush.msra.mxu0 %v76
    %403 = vmatpush.msra.mxu0 %v75
    %404 = vmatpush.msra.mxu0 %v74
    %405 = vmatmul.f32.gmra.mxu0 %v382
    %v406 = vpop.f32.mrf.mxu0
    %v407 = vadd.f32 %v387, %v406
    %408 = vmatmul.f32.gmra.mxu0 %v383
    %v409 = vpop.f32.mrf.mxu0
    %v410 = vadd.f32 %v387, %v409
    %411 = vmatmul.f32.gmra.mxu0 %v384
    %v412 = vpop.f32.mrf.mxu0
    %v413 = vadd.f32 %v387, %v412
    %414 = vmatmul.f32.gmra.mxu0 %v385
    %v415 = vpop.f32.mrf.mxu0
    %v416 = vadd.f32 %v387, %v415
    %417 = vdwg.mxu0
    %418 = vst [vmem:[#allocation5] sm:$0xff] %v407
    %419 = vst [vmem:[#allocation5 + $0x8] sm:$0xff] %v410
    %420 = vst [vmem:[#allocation5 + $0x10] sm:$0xff] %v413
    %421 = vst [vmem:[#allocation5 + $0x18] sm:$0xff] %v416
    %s422 = scalar_lea.vmem %s1, 64
    %v423 = vld [vmem:[%s422] sm:$0xff]
    %v424 = vld [vmem:[%s422 + $0x8] sm:$0xff]
    %v425 = vld [vmem:[%s422 + $0x10] sm:$0xff]
    %v426 = vld [vmem:[%s422 + $0x18] sm:$0xff]
    %v427 = vld [vmem:[%s422 + $0x20] sm:$0xf]
    %v428 = vld [vmem:[%s422 + $0x28] sm:$0xf]
    %v429 = vld [vmem:[%s422 + $0x30] sm:$0xf]
    %v430 = vld [vmem:[%s422 + $0x38] sm:$0xf]
    %v432 = vsel %vm103, %v427, 0
    %v435 = vsel %vm103, %v428, 0
    %v438 = vsel %vm103, %v429, 0
    %v441 = vsel %vm103, %v430, 0
    %443 = vmatpush.msra.mxu0 0.0
    %444 = vmatpush.msra.mxu0 0.0
    %445 = vmatpush.msra.mxu0 0.0
    %446 = vmatpush.msra.mxu0 0.0
    %447 = vmatpush.msra.mxu0 0.0
    %448 = vmatpush.msra.mxu0 0.0
    %449 = vmatpush.msra.mxu0 0.0
    %450 = vmatpush.msra.mxu0 0.0
    %451 = vmatpush.msra.mxu0 0.0
    %452 = vmatpush.msra.mxu0 0.0
    %453 = vmatpush.msra.mxu0 0.0
    %454 = vmatpush.msra.mxu0 0.0
    %455 = vmatpush.msra.mxu0 0.0
    %456 = vmatpush.msra.mxu0 0.0
    %457 = vmatpush.msra.mxu0 %v432
    %458 = vmatpush.msra.mxu0 %v423
    %459 = vmatmul.f32.gmra.mxu0 %v101
    %v460 = vpop.f32.mrf.mxu0
    %v461 = vadd.f32 0.0, %v460
    %462 = vdwg.mxu0
    %463 = vmatpush.msra.mxu0 0.0
    %464 = vmatpush.msra.mxu0 0.0
    %465 = vmatpush.msra.mxu0 0.0
    %466 = vmatpush.msra.mxu0 0.0
    %467 = vmatpush.msra.mxu0 0.0
    %468 = vmatpush.msra.mxu0 0.0
    %469 = vmatpush.msra.mxu0 0.0
    %470 = vmatpush.msra.mxu0 0.0
    %471 = vmatpush.msra.mxu0 0.0
    %472 = vmatpush.msra.mxu0 0.0
    %473 = vmatpush.msra.mxu0 0.0
    %474 = vmatpush.msra.mxu0 0.0
    %475 = vmatpush.msra.mxu0 0.0
    %476 = vmatpush.msra.mxu0 0.0
    %477 = vmatpush.msra.mxu0 %v435
    %478 = vmatpush.msra.mxu0 %v424
    %479 = vmatmul.f32.gmra.mxu0 %v101
    %v480 = vpop.f32.mrf.mxu0
    %v481 = vadd.f32 0.0, %v480
    %482 = vdwg.mxu0
    %483 = vmatpush.msra.mxu0 0.0
    %484 = vmatpush.msra.mxu0 0.0
    %485 = vmatpush.msra.mxu0 0.0
    %486 = vmatpush.msra.mxu0 0.0
    %487 = vmatpush.msra.mxu0 0.0
    %488 = vmatpush.msra.mxu0 0.0
    %489 = vmatpush.msra.mxu0 0.0
    %490 = vmatpush.msra.mxu0 0.0
    %491 = vmatpush.msra.mxu0 0.0
    %492 = vmatpush.msra.mxu0 0.0
    %493 = vmatpush.msra.mxu0 0.0
    %494 = vmatpush.msra.mxu0 0.0
    %495 = vmatpush.msra.mxu0 0.0
    %496 = vmatpush.msra.mxu0 0.0
    %497 = vmatpush.msra.mxu0 %v438
    %498 = vmatpush.msra.mxu0 %v425
    %499 = vmatmul.f32.gmra.mxu0 %v101
    %v500 = vpop.f32.mrf.mxu0
    %v501 = vadd.f32 0.0, %v500
    %502 = vdwg.mxu0
    %503 = vmatpush.msra.mxu0 0.0
    %504 = vmatpush.msra.mxu0 0.0
    %505 = vmatpush.msra.mxu0 0.0
    %506 = vmatpush.msra.mxu0 0.0
    %507 = vmatpush.msra.mxu0 0.0
    %508 = vmatpush.msra.mxu0 0.0
    %509 = vmatpush.msra.mxu0 0.0
    %510 = vmatpush.msra.mxu0 0.0
    %511 = vmatpush.msra.mxu0 0.0
    %512 = vmatpush.msra.mxu0 0.0
    %513 = vmatpush.msra.mxu0 0.0
    %514 = vmatpush.msra.mxu0 0.0
    %515 = vmatpush.msra.mxu0 0.0
    %516 = vmatpush.msra.mxu0 0.0
    %517 = vmatpush.msra.mxu0 %v441
    %518 = vmatpush.msra.mxu0 %v426
    %519 = vmatmul.f32.gmra.mxu0 %v101
    %v520 = vpop.f32.mrf.mxu0
    %v521 = vadd.f32 0.0, %v520
    %522 = vdwg.mxu0
    %v527 = vrot.slane %v481, 6
    %v528 = vrot.slane %v501, 4
    %v529 = vrot.slane %v521, 2
    %v530 = vsel %vm203, %v461, %v527
    %v531 = vsel %vm205, %v528, %v529
    %v532 = vsel %vm103, %v530, %v531
    %v533 = vsel %vm208, %v461, %v527
    %v534 = vsel %vm210, %v529, %v528
    %v535 = vsel %vm212, %v533, %v534
    %v536 = vrot.slane %v535, 2
    %v537 = vsel %vm205, %v461, %v527
    %v538 = vsel %vm203, %v528, %v529
    %v539 = vsel %vm103, %v538, %v537
    %v540 = vrot.slane %v539, 4
    %v541 = vsel %vm210, %v527, %v461
    %v542 = vsel %vm208, %v528, %v529
    %v543 = vsel %vm212, %v542, %v541
    %v544 = vrot.slane %v543, 6
    %v550 = vunpack.c.l.s4 1966171168
    %v551 = vunpack.c.0.s8 %v550
    %v552 = vperm.slane %v532, %v551
    %v554 = vunpack.c.l.s4 1966171168
    %v555 = vunpack.c.0.s8 %v554
    %v556 = vperm.slane %v536, %v555
    %v558 = vunpack.c.l.s4 1966171168
    %v559 = vunpack.c.0.s8 %v558
    %v560 = vperm.slane %v540, %v559
    %v562 = vunpack.c.l.s4 1966171168
    %v563 = vunpack.c.0.s8 %v562
    %v564 = vperm.slane %v544, %v563
    %565 = vmatpush.msra.mxu0 %v71
    %566 = vmatpush.msra.mxu0 %v69
    %567 = vmatpush.msra.mxu0 %v67
    %568 = vmatpush.msra.mxu0 %v65
    %569 = vmatpush.msra.mxu0 %v63
    %570 = vmatpush.msra.mxu0 %v61
    %571 = vmatpush.msra.mxu0 %v59
    %572 = vmatpush.msra.mxu0 %v57
    %573 = vmatpush.msra.mxu0 %v55
    %574 = vmatpush.msra.mxu0 %v53
    %575 = vmatpush.msra.mxu0 %v51
    %576 = vmatpush.msra.mxu0 %v49
    %577 = vmatpush.msra.mxu0 %v47
    %578 = vmatpush.msra.mxu0 %v45
    %579 = vmatpush.msra.mxu0 %v43
    %580 = vmatpush.msra.mxu0 %v41
    %581 = vmatmul.f32.gmra.mxu0 %v552
    %v582 = vpop.f32.mrf.mxu0
    %v583 = vadd.f32 %v244, %v582
    %584 = vmatmul.f32.gmra.mxu0 %v556
    %v585 = vpop.f32.mrf.mxu0
    %v586 = vadd.f32 %v244, %v585
    %587 = vmatmul.f32.gmra.mxu0 %v560
    %v588 = vpop.f32.mrf.mxu0
    %v589 = vadd.f32 %v244, %v588
    %590 = vmatmul.f32.gmra.mxu0 %v564
    %v591 = vpop.f32.mrf.mxu0
    %v592 = vadd.f32 %v244, %v591
    %593 = vdwg.mxu0
    %594 = vmatpush.msra.mxu0 %v72
    %595 = vmatpush.msra.mxu0 %v70
    %596 = vmatpush.msra.mxu0 %v68
    %597 = vmatpush.msra.mxu0 %v66
    %598 = vmatpush.msra.mxu0 %v64
    %599 = vmatpush.msra.mxu0 %v62
    %600 = vmatpush.msra.mxu0 %v60
    %601 = vmatpush.msra.mxu0 %v58
    %602 = vmatpush.msra.mxu0 %v56
    %603 = vmatpush.msra.mxu0 %v54
    %604 = vmatpush.msra.mxu0 %v52
    %605 = vmatpush.msra.mxu0 %v50
    %606 = vmatpush.msra.mxu0 %v48
    %607 = vmatpush.msra.mxu0 %v46
    %608 = vmatpush.msra.mxu0 %v44
    %609 = vmatpush.msra.mxu0 %v42
    %610 = vmatmul.f32.gmra.mxu0 %v552
    %v611 = vpop.f32.mrf.mxu0
    %v612 = vadd.f32 %v245, %v611
    %613 = vmatmul.f32.gmra.mxu0 %v556
    %v614 = vpop.f32.mrf.mxu0
    %v615 = vadd.f32 %v245, %v614
    %616 = vmatmul.f32.gmra.mxu0 %v560
    %v617 = vpop.f32.mrf.mxu0
    %v618 = vadd.f32 %v245, %v617
    %619 = vmatmul.f32.gmra.mxu0 %v564
    %v620 = vpop.f32.mrf.mxu0
    %v621 = vadd.f32 %v245, %v620
    %622 = vdwg.mxu0
    %v623 = vxor.u32 %v612, 2147483648
    %v624 = vxor.u32 %v615, 2147483648
    %v625 = vxor.u32 %v618, 2147483648
    %v626 = vxor.u32 %v621, 2147483648
    %v627 = vmul.f32 %v623, 1.442695
    %v628 = vpow.pop %v627
    %v629 = vmul.f32 %v624, 1.442695
    %v630 = vpow.pop %v629
    %v631 = vmul.f32 %v625, 1.442695
    %v632 = vpow.pop %v631
    %v633 = vmul.f32 %v626, 1.442695
    %v634 = vpow.pop %v633
    %v635 = vadd.f32 %v628, 1.0
    %v636 = vadd.f32 %v630, 1.0
    %v637 = vadd.f32 %v632, 1.0
    %v638 = vadd.f32 %v634, 1.0
    %v639 = vrcp.pop %v635
    %v640 = vmul.f32 %v635, %v639
    %v641 = vsub.f32 1.0, %v640
    %v642 = vmul.f32 %v639, %v641
    %v643 = vadd.f32 %v639, %v642
    %vm644 = vweird.f32 %v635
    %vm645 = vweird.f32 %v639
    %vm646 = vmor %vm644, %vm645
    %v647 = vsel %vm646, %v639, %v643
    %v648 = vand.u32 2147483647, %v635
    %vm649 = vcmp.eq.f32.partialorder %v648, 8.507059e+37
    %v650 = vand.u32 %v635, 2147483648
    %v651 = vor.u32 1.1754944e-38, %v650
    %v652 = vsel %vm649, %v651, %v647
    %v653 = vmul.f32 1.0, %v652
    %v654 = vrcp.pop %v636
    %v655 = vmul.f32 %v636, %v654
    %v656 = vsub.f32 1.0, %v655
    %v657 = vmul.f32 %v654, %v656
    %v658 = vadd.f32 %v654, %v657
    %vm659 = vweird.f32 %v636
    %vm660 = vweird.f32 %v654
    %vm661 = vmor %vm659, %vm660
    %v662 = vsel %vm661, %v654, %v658
    %v663 = vand.u32 2147483647, %v636
    %vm664 = vcmp.eq.f32.partialorder %v663, 8.507059e+37
    %v665 = vand.u32 %v636, 2147483648
    %v666 = vor.u32 1.1754944e-38, %v665
    %v667 = vsel %vm664, %v666, %v662
    %v668 = vmul.f32 1.0, %v667
    %v669 = vrcp.pop %v637
    %v670 = vmul.f32 %v637, %v669
    %v671 = vsub.f32 1.0, %v670
    %v672 = vmul.f32 %v669, %v671
    %v673 = vadd.f32 %v669, %v672
    %vm674 = vweird.f32 %v637
    %vm675 = vweird.f32 %v669
    %vm676 = vmor %vm674, %vm675
    %v677 = vsel %vm676, %v669, %v673
    %v678 = vand.u32 2147483647, %v637
    %vm679 = vcmp.eq.f32.partialorder %v678, 8.507059e+37
    %v680 = vand.u32 %v637, 2147483648
    %v681 = vor.u32 1.1754944e-38, %v680
    %v682 = vsel %vm679, %v681, %v677
    %v683 = vmul.f32 1.0, %v682
    %v684 = vrcp.pop %v638
    %v685 = vmul.f32 %v638, %v684
    %v686 = vsub.f32 1.0, %v685
    %v687 = vmul.f32 %v684, %v686
    %v688 = vadd.f32 %v684, %v687
    %vm689 = vweird.f32 %v638
    %vm690 = vweird.f32 %v684
    %vm691 = vmor %vm689, %vm690
    %v692 = vsel %vm691, %v684, %v688
    %v693 = vand.u32 2147483647, %v638
    %vm694 = vcmp.eq.f32.partialorder %v693, 8.507059e+37
    %v695 = vand.u32 %v638, 2147483648
    %v696 = vor.u32 1.1754944e-38, %v695
    %v697 = vsel %vm694, %v696, %v692
    %v698 = vmul.f32 1.0, %v697
    %v699 = vmul.f32 %v583, %v653
    %v700 = vmul.f32 %v586, %v668
    %v701 = vmul.f32 %v589, %v683
    %v702 = vmul.f32 %v592, %v698
    %703 = vmatpush.msra.mxu0 %v89
    %704 = vmatpush.msra.mxu0 %v88
    %705 = vmatpush.msra.mxu0 %v87
    %706 = vmatpush.msra.mxu0 %v86
    %707 = vmatpush.msra.mxu0 %v85
    %708 = vmatpush.msra.mxu0 %v84
    %709 = vmatpush.msra.mxu0 %v83
    %710 = vmatpush.msra.mxu0 %v82
    %711 = vmatpush.msra.mxu0 %v81
    %712 = vmatpush.msra.mxu0 %v80
    %713 = vmatpush.msra.mxu0 %v79
    %714 = vmatpush.msra.mxu0 %v78
    %715 = vmatpush.msra.mxu0 %v77
    %716 = vmatpush.msra.mxu0 %v76
    %717 = vmatpush.msra.mxu0 %v75
    %718 = vmatpush.msra.mxu0 %v74
    %719 = vmatmul.f32.gmra.mxu0 %v699
    %v720 = vpop.f32.mrf.mxu0
    %v721 = vadd.f32 %v387, %v720
    %722 = vmatmul.f32.gmra.mxu0 %v700
    %v723 = vpop.f32.mrf.mxu0
    %v724 = vadd.f32 %v387, %v723
    %725 = vmatmul.f32.gmra.mxu0 %v701
    %v726 = vpop.f32.mrf.mxu0
    %v727 = vadd.f32 %v387, %v726
    %728 = vmatmul.f32.gmra.mxu0 %v702
    %v729 = vpop.f32.mrf.mxu0
    %v730 = vadd.f32 %v387, %v729
    %731 = vdwg.mxu0
    %s732 = scalar_lea.vmem [#allocation5], 32
    %733 = vst [vmem:[%s732] sm:$0xff] %v721
    %734 = vst [vmem:[%s732 + $0x8] sm:$0xff] %v724
    %735 = vst [vmem:[%s732 + $0x10] sm:$0xff] %v727
    %736 = vst [vmem:[%s732 + $0x18] sm:$0xff] %v730
    // Predicated region
    $region30: #{tpu_custom_call.1} parent=1 // pred_check
      _
    $region31: #{tpu_custom_call.1} parent=1 // pred_check_branch
      %738 = sbr.rel (0) target = $region33
    $region32: #{tpu_custom_call.1} parent=1 // pred_region
      %740 = vsyncadd [#allocation4], 0
      %s741 = sshll.u32 [#allocation5], 4
      %s742 = int_to_ptr.vmem [resolvable:$true] %s741
      %s743 = sshll.u32 %s6, 4
      %s744 = int_to_ptr.hbm [resolvable:$true] %s743
      %749 = dma.vmem_to_hbm [thread:$0]  %s742, 1024, %s744, [#allocation4], 128, 128, 8
    $region33: #{tpu_custom_call.1} parent=1 // pred_fallthru
      _
    // Predicated region
    $region34: #{tpu_custom_call.1} parent=1 // pred_check
      _
    $region35: #{tpu_custom_call.1} parent=1 // pred_check_branch
      %751 = sbr.rel (0) target = $region37
    $region36: #{tpu_custom_call.1} parent=1 // pred_region
      %753 = dma.done [#allocation4], 1024
    $region37: #{tpu_custom_call.1} parent=1 // pred_fallthru
      _
    %754 = vsyncpa [#allocation3], 1
    %755 = vsyncpa [#allocation4], 1

</llo_original>
